<compile_context>
chip_gen: v7x
topology: tpu7x:2x2x1
jax: 0.10.0
libtpu: 0.0.40
codegen_flags: <defaults>
</compile_context>

<pallas_src>
import functools

import jax
import jax.numpy as jnp
from jax import lax
from jax.experimental import pallas as pl
from jax.experimental.pallas import tpu as pltpu


def inner_product_kernel(x_ref, w_ref, eps_ref, out_ref, *, noise_std):
    # x_ref:   (TB, D)  current batch tile (f32)
    # w_ref:   (8, D)   row 0 = [1, learnable...], rows 1..7 = 0 (MXU-native LHS)
    # eps_ref: (1, TB)  one standard normal per batch row (lane-dense)
    # out_ref: (2, TB)  row 0 = x @ w_full, row 1 = noise column (lane-dense)
    x = x_ref[...]
    w8 = w_ref[...]

    # (8, D) @ (TB, D)^T -> (8, TB) on the MXU; only row 0 is meaningful.
    scores = lax.dot_general(
        w8, x, (((1,), (1,)), ((), ())),
        preferred_element_type=jnp.float32,
        precision=lax.Precision.HIGHEST)
    xw = scores[0:1, :]                                          # (1, TB)

    # noise @ w_full  ~  N(0, (noise_std * ||w_full||_2)^2), one draw per row.
    w0 = w8[0:1, :]
    wnorm = jnp.sqrt(jnp.sum(w0 * w0, axis=-1, keepdims=True))   # (1, 1)
    nw = eps_ref[...] * (noise_std * wnorm)                      # (1, TB)

    # Single fused (sublane-masked, lane-dense) store of the whole tile.
    out_ref[...] = jnp.concatenate([xw, nw], axis=0).astype(out_ref.dtype)


def _round_up(n, m):
    return ((n + m - 1) // m) * m


def _vmem_capacity_bytes():
    try:
        return int(pltpu.get_tpu_info().vmem_capacity_bytes)
    except Exception:
        return 64 * 1024 * 1024  # conservative default (v7x-sized)


def _pick_tiling(batch, in_dim, itemsize):
    """Batch tile (multiple of 128, lane-dense output) + VMEM limit per chip gen."""
    vmem = _vmem_capacity_bytes()
    if vmem <= 64 * 1024 * 1024:            # v7x: 64 MiB VMEM per TensorCore
        target_tile_bytes = 8 * 1024 * 1024
        vmem_limit = 48 * 1024 * 1024
    else:                                    # v5e / v6e: 128 MiB VMEM
        target_tile_bytes = 16 * 1024 * 1024
        vmem_limit = 96 * 1024 * 1024

    batch_pad = _round_up(batch, 128)
    rows_budget = max(128, (target_tile_bytes // max(1, in_dim * itemsize)) // 128 * 128)
    # Keep >= ~4 grid blocks when the batch allows, so the "parallel" batch axis
    # shards across both v7x TensorCores and the DMA pipeline has depth.
    rows_quarter = max(128, _round_up(-(-batch_pad // 4), 128))
    block_b = max(128, min(rows_budget, rows_quarter, batch_pad))
    b_padded = _round_up(batch_pad, block_b)
    return block_b, b_padded, vmem_limit


def inner_product_layer_forward(x, learnable_weights, noise_std, key):
    """Mirrors InnerProductLayer.forward.  x: (B, in_dim) f32 -> (B, 2) f32."""
    B, in_dim = x.shape
    dtype = x.dtype
    itemsize = jnp.dtype(dtype).itemsize

    fixed = jnp.ones((1,), dtype=dtype)
    if in_dim > 1 and learnable_weights is not None:
        w_full = jnp.concatenate([fixed, learnable_weights.astype(dtype)])
    else:
        w_full = fixed
    # 8-row LHS (row 0 = w_full, rows 1..7 = 0): native sublane shape for the MXU.
    w_mat = jnp.zeros((8, in_dim), dtype=dtype).at[0, :].set(w_full)

    block_b, b_padded, vmem_limit = _pick_tiling(B, in_dim, itemsize)
    if b_padded != B:
        x = jnp.pad(x, ((0, b_padded - B), (0, 0)))

    # One standard normal per row; generated from a JAX key in the wrapper so it
    # is reproducible and independent of block_b / grid / core sharding.
    eps = jax.random.normal(key, (1, b_padded), dtype=jnp.float32)

    num_blocks = b_padded // block_b
    kernel = functools.partial(inner_product_kernel, noise_std=float(noise_std))

    out_t = pl.pallas_call(
        kernel,
        out_shape=jax.ShapeDtypeStruct((2, b_padded), dtype),
        grid_spec=pltpu.PrefetchScalarGridSpec(
            num_scalar_prefetch=0,
            grid=(num_blocks,),
            in_specs=[
                pl.BlockSpec((block_b, in_dim), lambda i: (i, 0)),  # x tile
                pl.BlockSpec((8, in_dim), lambda i: (0, 0)),        # weights (resident)
                pl.BlockSpec((1, block_b), lambda i: (0, i)),       # per-row eps
            ],
            out_specs=pl.BlockSpec((2, block_b), lambda i: (0, i)),
        ),
        compiler_params=pltpu.CompilerParams(
            dimension_semantics=("parallel",),       # megacore sharding on v7x
            vmem_limit_bytes=vmem_limit,
        ),
        cost_estimate=pl.CostEstimate(
            flops=2 * b_padded * in_dim + 2 * b_padded,
            transcendentals=0,
            bytes_accessed=(b_padded * in_dim + 8 * in_dim + 3 * b_padded) * itemsize,
        ),
    )(x, w_mat, eps)

    return out_t[:, :B].T  # (B, 2), matching the PyTorch layer's output layout


if __name__ == "__main__":
    in_dim = 64      # matches a_true = torch.zeros(64) in the module
    batch = 256
    noise_std = 0.2

    root = jax.random.PRNGKey(0)
    kx, kw, kn1, kn2 = jax.random.split(root, 4)
    x = jax.random.normal(kx, (batch, in_dim), dtype=jnp.float32)

    # Module init: learnable_weights = a_true[1:] = zeros(63).
    lw_init = jnp.zeros((in_dim - 1,), dtype=jnp.float32)

    out = jax.block_until_ready(
        inner_product_layer_forward(x, lw_init, noise_std, kn1))
    assert out.shape == (batch, 2), out.shape
    assert bool(jnp.all(jnp.isfinite(out)))

    # Deterministic column: x @ w_full (w_full = [1, 0, ..., 0] at init).
    w_full = jnp.concatenate([jnp.ones((1,), jnp.float32), lw_init])
    ref0 = jnp.dot(x, w_full, precision=lax.Precision.HIGHEST)
    assert jnp.allclose(out[:, 0], ref0, atol=5e-3, rtol=5e-3)

    # Noise column ~ N(0, (noise_std * ||w_full||)^2) = N(0, 0.2^2) at init.
    s = float(jnp.std(out[:, 1]))
    assert 0.08 < s < 0.45, s

    # Non-trivial learnable weights exercise the full reduce + norm scaling.
    lw_rand = 0.1 * jax.random.normal(kw, (in_dim - 1,), dtype=jnp.float32)
    out2 = jax.block_until_ready(
        inner_product_layer_forward(x, lw_rand, noise_std, kn2))
    w_full2 = jnp.concatenate([jnp.ones((1,), jnp.float32), lw_rand])
    ref2 = jnp.dot(x, w_full2, precision=lax.Precision.HIGHEST)
    assert jnp.allclose(out2[:, 0], ref2, atol=5e-3, rtol=5e-3)
    assert bool(jnp.all(jnp.isfinite(out2)))

    print("KERNEL_OK")
</pallas_src>

<mosaic_0001>
module attributes {stable_mosaic.version = 11 : i64} {
  func.func @inner_product_kernel(%arg0: i32, %arg1: memref<128x64xf32, #tpu.memory_space<vmem>>, %arg2: memref<8x64xf32, #tpu.memory_space<vmem>>, %arg3: memref<1x128xf32, #tpu.memory_space<vmem>>, %arg4: memref<2x128xf32, #tpu.memory_space<vmem>>) attributes {dimension_semantics = [#tpu.dimension_semantics<parallel>], iteration_bounds = array<i64: 2>, scalar_prefetch = 0 : i64, scratch_operands = 0 : i64, tpu.core_type = #tpu.core_type<tc>, window_params = [{transform_indices = @transform_0, window_bounds = array<i64: 128, 64>}, {pipeline_mode = #tpu.pipeline_mode<synchronous>, transform_indices = @transform_1, window_bounds = array<i64: 8, 64>}, {transform_indices = @transform_2, window_bounds = array<i64: 1, 128>}, {transform_indices = @transform_3, window_bounds = array<i64: 2, 128>}]} {
    %c0 = arith.constant 0 : index
    %c0_0 = arith.constant 0 : index
    %0 = vector.load %arg1[%c0, %c0_0] : memref<128x64xf32, #tpu.memory_space<vmem>>, vector<128x64xf32>
    %c0_1 = arith.constant 0 : index
    %c0_2 = arith.constant 0 : index
    %1 = vector.load %arg2[%c0_1, %c0_2] : memref<8x64xf32, #tpu.memory_space<vmem>>, vector<8x64xf32>
    %cst = arith.constant dense<0.000000e+00> : vector<8x128xf32>
    %2 = tpu.matmul %1, %0, %cst {dimension_numbers = #tpu.dot_dimension_numbers<[1], [1], [0], [0], [0, 0, 1, 0], [], []>, precision = #tpu.contract_precision<fp32>} : vector<8x64xf32>, vector<128x64xf32>, vector<8x128xf32> -> vector<8x128xf32>
    %3 = vector.extract_strided_slice %2 {offsets = [0, 0], sizes = [1, 128], strides = [1, 1]} : vector<8x128xf32> to vector<1x128xf32>
    %4 = vector.extract_strided_slice %1 {offsets = [0, 0], sizes = [1, 64], strides = [1, 1]} : vector<8x64xf32> to vector<1x64xf32>
    %5 = arith.mulf %4, %4 : vector<1x64xf32>
    %cst_3 = arith.constant dense<0.000000e+00> : vector<1xf32>
    %6 = vector.multi_reduction <add>, %5, %cst_3 [1] : vector<1x64xf32> to vector<1xf32>
    %7 = vector.shape_cast %6 : vector<1xf32> to vector<1x1xf32>
    %8 = math.sqrt %7 : vector<1x1xf32>
    %c0_4 = arith.constant 0 : index
    %c0_5 = arith.constant 0 : index
    %9 = vector.load %arg3[%c0_4, %c0_5] : memref<1x128xf32, #tpu.memory_space<vmem>>, vector<1x128xf32>
    %cst_6 = arith.constant 2.000000e-01 : f32
    %10 = vector.broadcast %cst_6 : f32 to vector<1x1xf32>
    %11 = arith.mulf %10, %8 : vector<1x1xf32>
    %12 = vector.broadcast %11 : vector<1x1xf32> to vector<1x128xf32>
    %13 = arith.mulf %9, %12 : vector<1x128xf32>
    %14 = tpu.concatenate %3, %13 in 0 : vector<1x128xf32>, vector<1x128xf32> -> vector<2x128xf32>
    %c0_7 = arith.constant 0 : index
    %c0_8 = arith.constant 0 : index
    %15 = vector.load %arg4[%c0_7, %c0_8] : memref<2x128xf32, #tpu.memory_space<vmem>>, vector<2x128xf32>
    tpu.vector_store %arg4[%c0_7, %c0_8], %14 {strides = array<i32>} : memref<2x128xf32, #tpu.memory_space<vmem>>, vector<2x128xf32>,
    return
  }
  func.func @transform_0(%arg0: i32) -> (i32, i32) {
    %c0_i32 = arith.constant 0 : i32
    %c0_i32_0 = arith.constant 0 : i32
    return %arg0, %c0_i32 : i32, i32
  }
  func.func @transform_1(%arg0: i32) -> (i32, i32) {
    %c0_i32 = arith.constant 0 : i32
    %c0_i32_0 = arith.constant 0 : i32
    %c0_i32_1 = arith.constant 0 : i32
    return %c0_i32, %c0_i32_0 : i32, i32
  }
  func.func @transform_2(%arg0: i32) -> (i32, i32) {
    %c0_i32 = arith.constant 0 : i32
    %c0_i32_0 = arith.constant 0 : i32
    return %c0_i32, %arg0 : i32, i32
  }
  func.func @transform_3(%arg0: i32) -> (i32, i32) {
    %c0_i32 = arith.constant 0 : i32
    %c0_i32_0 = arith.constant 0 : i32
    return %c0_i32, %arg0 : i32, i32
  }
}

</mosaic_0001>

<llo_original>
// kernel: tpu_custom_call.1
$region0: #{tpu_custom_call.1}
  #allocation0 [shape = 'u32[]', space=smem, size = 0x4, offset = 0x4, fixed_abs, tag = 'smem constant byte address 0x4 - core index']
  #allocation1 [shape = 'u32[144,128]{1,0:T(1,128)}', space=vmem, size = 0x12000, scoped, tag = 'internal scratch']
  %s0 = inlined_call_operand.vmem [shape: f32[256,64], index: 0, kind: input, shape index: {}]
  %s1 = inlined_call_operand.vmem [shape: f32[8,64], index: 1, kind: input, shape index: {}]
  %s2 = inlined_call_operand.vmem [shape: f32[1,256], index: 2, kind: input, shape index: {}]
  %s3 = inlined_call_operand.hbm [shape: f32[2,256], index: 3, kind: output, shape index: {}]
  %s4 = sld [smem:[#allocation0]]
  $region45: #{tpu_custom_call.1} parent=0
    _
  %s6 = ssub.s32 1, %s4
  %s7 = scalar_select 0, %s6, %s4
  $region1: #{tpu_custom_call.1} parent=0
    #allocation2 [shape = 'u8[2048]{0}', space=vmem, size = 0x800, scoped, tag = 'output window, operand 0']
    #allocation3 [shape = 's32[2]{0}', space=sflag, size = 0x8, scoped, tag = 'scoped memory for tpu_custom_call.1']
    %8 = vsyncpa [#allocation3], 0
    %s9 = scalar_lea.sflag [#allocation3], 1
    %10 = vsyncpa %s9, 0
    loop: start=0, step=1, limit=4
    $region2: #{tpu_custom_call.1} parent=1 // loop_pre_header
      _
    $region3: #{tpu_custom_call.1} parent=1 // loop_header
      %s12 = sphi 0, %s16
      %p13 = scmp.ge.s32.totalorder %s12, 4
      %s22 = sphi 0, %s24
      %s25 = sphi 0, %s22
      %s26 = sphi 0, %s25
      %s42 = sphi 0, %s26
      %s46 = sphi 0, %s46
      %s48 = sphi 0, %s46
      %s49 = sphi 0, %s48
      %s63 = sphi 0, %s49
      %s69 = sphi 0, %s71
      %s72 = sphi 0, %s69
      %s73 = sphi 0, %s72
      %s89 = sphi 0, %s73
      %s95 = sphi 0, %s97
      %s98 = sphi 0, %s95
      %s99 = sphi 0, %s98
      %s115 = sphi 0, %s99
    $region4: #{tpu_custom_call.1} parent=1 // loop_header_branch
      %15 = sbr.rel (%p13) target = $region8
    $region5: #{tpu_custom_call.1} parent=1 // loop_body
      %s17 = ssub.s32 %s12, 1
      %s18 = ssub.s32 %s12, 2
      %s19 = sadd.s32 %s12, 1
      %s20 = ssub.s32 %s12, %s19
      %p21 = scmp.eq.s32.totalorder %s20, 0
      %s23 = sadd.s32 %s22, 1
      %s24 = scalar_select %p21, %s22, %s23
      %p27 = pneg %p21
      %p28 = scmp.eq.s32.totalorder %s12, 1
      %p29 = por %p27, %p28
      %p30 = scmp.ne.s32.totalorder %s22, %s25
      %p31 = scmp.eq.s32.totalorder %s12, 0
      %p32 = por %p30, %p31
      %p33 = scmp.ne.s32.totalorder %s22, %s25
      %p34 = scmp.eq.s32.totalorder %s17, 1
      %p35 = por %p33, %p34
      %p36 = scmp.ne.s32.totalorder %s25, %s26
      %p37 = scmp.eq.s32.totalorder %s17, 0
      %p38 = por %p36, %p37
      %p39 = scmp.ne.s32.totalorder %s25, %s26
      %p40 = scmp.eq.s32.totalorder %s18, 1
      %p41 = por %p39, %p40
      %p43 = scmp.ne.s32.totalorder %s26, %s42
      %p44 = scmp.eq.s32.totalorder %s18, 0
      %p45 = por %p43, %p44
      %s47 = sadd.s32 %s46, 1
      %p50 = scmp.eq.s32.totalorder %s12, 1
      %p51 = scmp.ne.s32.totalorder %s46, %s48
      %p52 = scmp.eq.s32.totalorder %s12, 0
      %p53 = por %p51, %p52
      %p54 = scmp.ne.s32.totalorder %s46, %s48
      %p55 = scmp.eq.s32.totalorder %s17, 1
      %p56 = por %p54, %p55
      %p57 = scmp.ne.s32.totalorder %s48, %s49
      %p58 = scmp.eq.s32.totalorder %s17, 0
      %p59 = por %p57, %p58
      %p60 = scmp.ne.s32.totalorder %s48, %s49
      %p61 = scmp.eq.s32.totalorder %s18, 1
      %p62 = por %p60, %p61
      %p64 = scmp.ne.s32.totalorder %s49, %s63
      %p65 = scmp.eq.s32.totalorder %s18, 0
      %p66 = por %p64, %p65
      %s67 = ssub.s32 %s12, %s19
      %p68 = scmp.eq.s32.totalorder %s67, 0
      %s70 = sadd.s32 %s69, 1
      %s71 = scalar_select %p68, %s69, %s70
      %p74 = pneg %p68
      %p75 = scmp.eq.s32.totalorder %s12, 1
      %p76 = por %p74, %p75
      %p77 = scmp.ne.s32.totalorder %s69, %s72
      %p78 = scmp.eq.s32.totalorder %s12, 0
      %p79 = por %p77, %p78
      %p80 = scmp.ne.s32.totalorder %s69, %s72
      %p81 = scmp.eq.s32.totalorder %s17, 1
      %p82 = por %p80, %p81
      %p83 = scmp.ne.s32.totalorder %s72, %s73
      %p84 = scmp.eq.s32.totalorder %s17, 0
      %p85 = por %p83, %p84
      %p86 = scmp.ne.s32.totalorder %s72, %s73
      %p87 = scmp.eq.s32.totalorder %s18, 1
      %p88 = por %p86, %p87
      %p90 = scmp.ne.s32.totalorder %s73, %s89
      %p91 = scmp.eq.s32.totalorder %s18, 0
      %p92 = por %p90, %p91
      %s93 = ssub.s32 %s12, %s19
      %p94 = scmp.eq.s32.totalorder %s93, 0
      %s96 = sadd.s32 %s95, 1
      %s97 = scalar_select %p94, %s95, %s96
      %p100 = pneg %p94
      %p101 = scmp.eq.s32.totalorder %s12, 1
      %p102 = por %p100, %p101
      %p103 = scmp.ne.s32.totalorder %s95, %s98
      %p104 = scmp.eq.s32.totalorder %s12, 0
      %p105 = por %p103, %p104
      %p106 = scmp.ne.s32.totalorder %s95, %s98
      %p107 = scmp.eq.s32.totalorder %s17, 1
      %p108 = por %p106, %p107
      %p109 = scmp.ne.s32.totalorder %s98, %s99
      %p110 = scmp.eq.s32.totalorder %s17, 0
      %p111 = por %p109, %p110
      %p112 = scmp.ne.s32.totalorder %s98, %s99
      %p113 = scmp.eq.s32.totalorder %s18, 1
      %p114 = por %p112, %p113
      %p116 = scmp.ne.s32.totalorder %s99, %s115
      %p117 = scmp.eq.s32.totalorder %s18, 0
      %p118 = por %p116, %p117
      %p119 = scmp.le.s32.totalorder 1, %s12
      %p120 = scmp.lt.s32.totalorder %s12, 3
      %p121 = pnand %p119, %p120
      %p122 = pneg %p121
      // Predicated region
      $region9: #{tpu_custom_call.1} parent=5 // pred_check
        _
      $region10: #{tpu_custom_call.1} parent=5 // pred_check_branch
        %124 = sbr.rel (%p121) target = $region12
      $region11: #{tpu_custom_call.1} parent=5 // pred_region
        %s125 = ssub.s32 %s12, 1
        // Predicated region
        $region13: #{tpu_custom_call.1} parent=11 // pred_check
          %p126 = pneg %p59
        $region14: #{tpu_custom_call.1} parent=11 // pred_check_branch
          %128 = sbr.rel (%p126) target = $region16
        $region15: #{tpu_custom_call.1} parent=11 // pred_region
          _
        $region16: #{tpu_custom_call.1} parent=11 // pred_fallthru
          _
      $region12: #{tpu_custom_call.1} parent=5 // pred_fallthru
        _
      %p129 = scmp.lt.s32.totalorder %s12, 2
      // Predicated region
      $region17: #{tpu_custom_call.1} parent=5 // pred_check
        %p130 = pneg %p129
      $region18: #{tpu_custom_call.1} parent=5 // pred_check_branch
        %132 = sbr.rel (%p130) target = $region20
      $region19: #{tpu_custom_call.1} parent=5 // pred_region
        // Predicated region
        $region21: #{tpu_custom_call.1} parent=19 // pred_check
          %p133 = pneg %p32
        $region22: #{tpu_custom_call.1} parent=19 // pred_check_branch
          %135 = sbr.rel (%p133) target = $region24
        $region23: #{tpu_custom_call.1} parent=19 // pred_region
          %s136 = smul.u32 16, %s12
          %p137 = scmp.lt.s32.totalorder %s136, 31
          %s138 = scalar_select %p137, %s136, 31
          %s139 = smul.addr %s138, 8
          %s140 = scalar_lea.vmem %s0, %s139
          %s141 = smul.u32 16, %s12
        $region24: #{tpu_custom_call.1} parent=19 // pred_fallthru
          _
        // Predicated region
        $region25: #{tpu_custom_call.1} parent=19 // pred_check
          %p142 = pneg %p79
        $region26: #{tpu_custom_call.1} parent=19 // pred_check_branch
          %144 = sbr.rel (%p142) target = $region28
        $region27: #{tpu_custom_call.1} parent=19 // pred_region
          %p145 = scmp.lt.s32.totalorder %s12, 1
          %s146 = scalar_select %p145, %s12, 1
          %s147 = scalar_lea.vmem %s2, %s146
        $region28: #{tpu_custom_call.1} parent=19 // pred_fallthru
          _
      $region20: #{tpu_custom_call.1} parent=5 // pred_fallthru
        _
      %p148 = scmp.le.s32.totalorder 1, %s12
      %p149 = scmp.lt.s32.totalorder %s12, 3
      %p150 = pnand %p148, %p149
      %p151 = pneg %p150
      // Predicated region
      $region29: #{tpu_custom_call.1} parent=5 // pred_check
        _
      $region30: #{tpu_custom_call.1} parent=5 // pred_check_branch
        %153 = sbr.rel (%p150) target = $region32
      $region31: #{tpu_custom_call.1} parent=5 // pred_region
        %s154 = ssub.s32 %s12, 1
        %s155 = smul.u32 16, %s17
        %p156 = scmp.lt.s32.totalorder %s155, 31
        %s157 = scalar_select %p156, %s155, 31
        %s158 = smul.addr %s157, 8
        %s159 = scalar_lea.vmem %s0, %s158
        %p160 = pneg %p38
        %p161 = pneg %p35
        %p162 = pneg %p59
        %p163 = pneg %p56
        %p164 = scmp.lt.s32.totalorder %s17, 1
        %s165 = scalar_select %p164, %s17, 1
        %s166 = scalar_lea.vmem %s2, %s165
        %p167 = pneg %p85
        %p168 = pneg %p82
        %p169 = pneg %p111
        %p170 = pneg %p108
        %s171 = sand.u32 %s98, 1
        %s172 = scalar_lea.sflag [#allocation3], %s171
        %s173 = sand.u32 %s98, 1
        %s174 = smul.addr %s173, 2
        %s175 = scalar_lea.vmem [#allocation2], %s174
        %s176 = smul.u32 16, %s17
        %p177 = scmp.lt.s32.totalorder %s176, 31
        %s178 = scalar_select %p177, %s176, 31
        %s179 = smul.addr %s178, 8
        %s180 = scalar_lea.vmem %s0, %s179
        %s181 = smul.u32 16, %s17
        %p182 = scmp.lt.s32.totalorder %s17, 1
        %s183 = scalar_select %p182, %s17, 1
        %s184 = scalar_lea.vmem %s2, %s183
        %v185 = vld [vmem:[%s180] sm:$0xff]
        %v186 = vld [vmem:[%s180 + $0x8] sm:$0xff]
        %v187 = vld [vmem:[%s180 + $0x10] sm:$0xff]
        %v188 = vld [vmem:[%s180 + $0x18] sm:$0xff]
        %v189 = vld [vmem:[%s180 + $0x20] sm:$0xff]
        %v190 = vld [vmem:[%s180 + $0x28] sm:$0xff]
        %v191 = vld [vmem:[%s180 + $0x30] sm:$0xff]
        %v192 = vld [vmem:[%s180 + $0x38] sm:$0xff]
        %v193 = vld [vmem:[%s180 + $0x40] sm:$0xff]
        %v194 = vld [vmem:[%s180 + $0x48] sm:$0xff]
        %v195 = vld [vmem:[%s180 + $0x50] sm:$0xff]
        %v196 = vld [vmem:[%s180 + $0x58] sm:$0xff]
        %v197 = vld [vmem:[%s180 + $0x60] sm:$0xff]
        %v198 = vld [vmem:[%s180 + $0x68] sm:$0xff]
        %v199 = vld [vmem:[%s180 + $0x70] sm:$0xff]
        %v200 = vld [vmem:[%s180 + $0x78] sm:$0xff]
        %v201 = vld [vmem:[%s1] sm:$0xff]
        %vm202 = vcmask 523264
        %v204 = vsel %vm202, %v201, 0
        %v207 = vsel %vm202, %v185, 0
        %v210 = vsel %vm202, %v186, 0
        %v213 = vsel %vm202, %v187, 0
        %v216 = vsel %vm202, %v188, 0
        %v219 = vsel %vm202, %v189, 0
        %v222 = vsel %vm202, %v190, 0
        %v225 = vsel %vm202, %v191, 0
        %v228 = vsel %vm202, %v192, 0
        %v231 = vsel %vm202, %v193, 0
        %v234 = vsel %vm202, %v194, 0
        %v237 = vsel %vm202, %v195, 0
        %v240 = vsel %vm202, %v196, 0
        %v243 = vsel %vm202, %v197, 0
        %v246 = vsel %vm202, %v198, 0
        %v249 = vsel %vm202, %v199, 0
        %v252 = vsel %vm202, %v200, 0
        %254 = vmatprep.subr.mxu0 0.0
        %v255 = vand.u32 %v207, 4294901760
        %256 = vmatpush1.xpose.msra.mxu0 %v255
        %257 = vmatprep.subr.mxu0 0.0
        %v258 = vand.u32 %v210, 4294901760
        %259 = vmatpush1.xpose.msra.mxu0 %v258
        %260 = vmatprep.subr.mxu0 0.0
        %v261 = vand.u32 %v213, 4294901760
        %262 = vmatpush1.xpose.msra.mxu0 %v261
        %263 = vmatprep.subr.mxu0 0.0
        %v264 = vand.u32 %v216, 4294901760
        %265 = vmatpush1.xpose.msra.mxu0 %v264
        %266 = vmatprep.subr.mxu0 0.0
        %v267 = vand.u32 %v219, 4294901760
        %268 = vmatpush1.xpose.msra.mxu0 %v267
        %269 = vmatprep.subr.mxu0 0.0
        %v270 = vand.u32 %v222, 4294901760
        %271 = vmatpush1.xpose.msra.mxu0 %v270
        %272 = vmatprep.subr.mxu0 0.0
        %v273 = vand.u32 %v225, 4294901760
        %274 = vmatpush1.xpose.msra.mxu0 %v273
        %275 = vmatprep.subr.mxu0 0.0
        %v276 = vand.u32 %v228, 4294901760
        %277 = vmatpush1.xpose.msra.mxu0 %v276
        %278 = vmatprep.subr.mxu0 0.0
        %v279 = vand.u32 %v231, 4294901760
        %280 = vmatpush1.xpose.msra.mxu0 %v279
        %281 = vmatprep.subr.mxu0 0.0
        %v282 = vand.u32 %v234, 4294901760
        %283 = vmatpush1.xpose.msra.mxu0 %v282
        %284 = vmatprep.subr.mxu0 0.0
        %v285 = vand.u32 %v237, 4294901760
        %286 = vmatpush1.xpose.msra.mxu0 %v285
        %287 = vmatprep.subr.mxu0 0.0
        %v288 = vand.u32 %v240, 4294901760
        %289 = vmatpush1.xpose.msra.mxu0 %v288
        %290 = vmatprep.subr.mxu0 0.0
        %v291 = vand.u32 %v243, 4294901760
        %292 = vmatpush1.xpose.msra.mxu0 %v291
        %293 = vmatprep.subr.mxu0 0.0
        %v294 = vand.u32 %v246, 4294901760
        %295 = vmatpush1.xpose.msra.mxu0 %v294
        %296 = vmatprep.subr.mxu0 0.0
        %v297 = vand.u32 %v249, 4294901760
        %298 = vmatpush1.xpose.msra.mxu0 %v297
        %299 = vmatprep.subr.mxu0 0.0
        %v300 = vand.u32 %v252, 4294901760
        %301 = vmatpush1.xpose.msra.mxu0 %v300
        %302 = vmatprep.subr.mxu0 0.0
        %303 = vmatpush1.xpose.msra.mxu0 0.0
        %304 = vmatprep.subr.mxu0 0.0
        %305 = vmatpush1.xpose.msra.mxu0 0.0
        %306 = vmatprep.subr.mxu0 0.0
        %307 = vmatpush1.xpose.msra.mxu0 0.0
        %308 = vmatprep.subr.mxu0 0.0
        %309 = vmatpush1.xpose.msra.mxu0 0.0
        %310 = vmatprep.subr.mxu0 0.0
        %311 = vmatpush1.xpose.msra.mxu0 0.0
        %312 = vmatprep.subr.mxu0 0.0
        %313 = vmatpush1.xpose.msra.mxu0 0.0
        %314 = vmatprep.subr.mxu0 0.0
        %315 = vmatpush1.xpose.msra.mxu0 0.0
        %316 = vmatprep.subr.mxu0 0.0
        %317 = vmatpush1.xpose.msra.mxu0 0.0
        %318 = vmatprep.subr.mxu0 0.0
        %319 = vmatpush1.xpose.msra.mxu0 0.0
        %320 = vmatprep.subr.mxu0 0.0
        %321 = vmatpush1.xpose.msra.mxu0 0.0
        %322 = vmatprep.subr.mxu0 0.0
        %323 = vmatpush1.xpose.msra.mxu0 0.0
        %324 = vmatprep.subr.mxu0 0.0
        %325 = vmatpush1.xpose.msra.mxu0 0.0
        %326 = vmatprep.subr.mxu0 0.0
        %327 = vmatpush1.xpose.msra.mxu0 0.0
        %328 = vmatprep.subr.mxu0 0.0
        %329 = vmatpush1.xpose.msra.mxu0 0.0
        %330 = vmatprep.subr.mxu0 0.0
        %331 = vmatpush1.xpose.msra.mxu0 0.0
        %332 = vmatprep.subr.mxu0 0.0
        %333 = vmatpush1.xpose.msra.mxu0 0.0
        %334 = vmatprep.mubr.f32.mxu0 0.0
        %v335 = vand.u32 %v204, 4294901760
        %v336 = vsub.f32 %v204, %v335
        %v337 = vand.u32 %v336, 4294901760
        %v338 = vsub.f32 %v336, %v337
        %v339 = vand.u32 %v338, 4294901760
        %340 = vmatmul.mubr.f32.gmra.mrb[0].mxu0 %v339
        %v341 = vpop.f32.mrb[0].mxu0
        %v342 = vadd.f32 0.0, %v341
        %v343 = vpop.f32.mrb[0].mxu0
        %344 = vdwg.mxu0
        %345 = vmatprep.subr.mxu0 0.0
        %v346 = vand.u32 %v207, 4294901760
        %v347 = vsub.f32 %v207, %v346
        %v348 = vand.u32 %v347, 4294901760
        %v349 = vsub.f32 %v347, %v348
        %v350 = vand.u32 %v349, 4294901760
        %351 = vmatpush1.xpose.msra.mxu0 %v350
        %352 = vmatprep.subr.mxu0 0.0
        %v353 = vand.u32 %v210, 4294901760
        %v354 = vsub.f32 %v210, %v353
        %v355 = vand.u32 %v354, 4294901760
        %v356 = vsub.f32 %v354, %v355
        %v357 = vand.u32 %v356, 4294901760
        %358 = vmatpush1.xpose.msra.mxu0 %v357
        %359 = vmatprep.subr.mxu0 0.0
        %v360 = vand.u32 %v213, 4294901760
        %v361 = vsub.f32 %v213, %v360
        %v362 = vand.u32 %v361, 4294901760
        %v363 = vsub.f32 %v361, %v362
        %v364 = vand.u32 %v363, 4294901760
        %365 = vmatpush1.xpose.msra.mxu0 %v364
        %366 = vmatprep.subr.mxu0 0.0
        %v367 = vand.u32 %v216, 4294901760
        %v368 = vsub.f32 %v216, %v367
        %v369 = vand.u32 %v368, 4294901760
        %v370 = vsub.f32 %v368, %v369
        %v371 = vand.u32 %v370, 4294901760
        %372 = vmatpush1.xpose.msra.mxu0 %v371
        %373 = vmatprep.subr.mxu0 0.0
        %v374 = vand.u32 %v219, 4294901760
        %v375 = vsub.f32 %v219, %v374
        %v376 = vand.u32 %v375, 4294901760
        %v377 = vsub.f32 %v375, %v376
        %v378 = vand.u32 %v377, 4294901760
        %379 = vmatpush1.xpose.msra.mxu0 %v378
        %380 = vmatprep.subr.mxu0 0.0
        %v381 = vand.u32 %v222, 4294901760
        %v382 = vsub.f32 %v222, %v381
        %v383 = vand.u32 %v382, 4294901760
        %v384 = vsub.f32 %v382, %v383
        %v385 = vand.u32 %v384, 4294901760
        %386 = vmatpush1.xpose.msra.mxu0 %v385
        %387 = vmatprep.subr.mxu0 0.0
        %v388 = vand.u32 %v225, 4294901760
        %v389 = vsub.f32 %v225, %v388
        %v390 = vand.u32 %v389, 4294901760
        %v391 = vsub.f32 %v389, %v390
        %v392 = vand.u32 %v391, 4294901760
        %393 = vmatpush1.xpose.msra.mxu0 %v392
        %394 = vmatprep.subr.mxu0 0.0
        %v395 = vand.u32 %v228, 4294901760
        %v396 = vsub.f32 %v228, %v395
        %v397 = vand.u32 %v396, 4294901760
        %v398 = vsub.f32 %v396, %v397
        %v399 = vand.u32 %v398, 4294901760
        %400 = vmatpush1.xpose.msra.mxu0 %v399
        %401 = vmatprep.subr.mxu0 0.0
        %v402 = vand.u32 %v231, 4294901760
        %v403 = vsub.f32 %v231, %v402
        %v404 = vand.u32 %v403, 4294901760
        %v405 = vsub.f32 %v403, %v404
        %v406 = vand.u32 %v405, 4294901760
        %407 = vmatpush1.xpose.msra.mxu0 %v406
        %408 = vmatprep.subr.mxu0 0.0
        %v409 = vand.u32 %v234, 4294901760
        %v410 = vsub.f32 %v234, %v409
        %v411 = vand.u32 %v410, 4294901760
        %v412 = vsub.f32 %v410, %v411
        %v413 = vand.u32 %v412, 4294901760
        %414 = vmatpush1.xpose.msra.mxu0 %v413
        %415 = vmatprep.subr.mxu0 0.0
        %v416 = vand.u32 %v237, 4294901760
        %v417 = vsub.f32 %v237, %v416
        %v418 = vand.u32 %v417, 4294901760
        %v419 = vsub.f32 %v417, %v418
        %v420 = vand.u32 %v419, 4294901760
        %421 = vmatpush1.xpose.msra.mxu0 %v420
        %422 = vmatprep.subr.mxu0 0.0
        %v423 = vand.u32 %v240, 4294901760
        %v424 = vsub.f32 %v240, %v423
        %v425 = vand.u32 %v424, 4294901760
        %v426 = vsub.f32 %v424, %v425
        %v427 = vand.u32 %v426, 4294901760
        %428 = vmatpush1.xpose.msra.mxu0 %v427
        %429 = vmatprep.subr.mxu0 0.0
        %v430 = vand.u32 %v243, 4294901760
        %v431 = vsub.f32 %v243, %v430
        %v432 = vand.u32 %v431, 4294901760
        %v433 = vsub.f32 %v431, %v432
        %v434 = vand.u32 %v433, 4294901760
        %435 = vmatpush1.xpose.msra.mxu0 %v434
        %436 = vmatprep.subr.mxu0 0.0
        %v437 = vand.u32 %v246, 4294901760
        %v438 = vsub.f32 %v246, %v437
        %v439 = vand.u32 %v438, 4294901760
        %v440 = vsub.f32 %v438, %v439
        %v441 = vand.u32 %v440, 4294901760
        %442 = vmatpush1.xpose.msra.mxu0 %v441
        %443 = vmatprep.subr.mxu0 0.0
        %v444 = vand.u32 %v249, 4294901760
        %v445 = vsub.f32 %v249, %v444
        %v446 = vand.u32 %v445, 4294901760
        %v447 = vsub.f32 %v445, %v446
        %v448 = vand.u32 %v447, 4294901760
        %449 = vmatpush1.xpose.msra.mxu0 %v448
        %450 = vmatprep.subr.mxu0 0.0
        %v451 = vand.u32 %v252, 4294901760
        %v452 = vsub.f32 %v252, %v451
        %v453 = vand.u32 %v452, 4294901760
        %v454 = vsub.f32 %v452, %v453
        %v455 = vand.u32 %v454, 4294901760
        %456 = vmatpush1.xpose.msra.mxu0 %v455
        %457 = vmatprep.subr.mxu0 0.0
        %458 = vmatpush1.xpose.msra.mxu0 0.0
        %459 = vmatprep.subr.mxu0 0.0
        %460 = vmatpush1.xpose.msra.mxu0 0.0
        %461 = vmatprep.subr.mxu0 0.0
        %462 = vmatpush1.xpose.msra.mxu0 0.0
        %463 = vmatprep.subr.mxu0 0.0
        %464 = vmatpush1.xpose.msra.mxu0 0.0
        %465 = vmatprep.subr.mxu0 0.0
        %466 = vmatpush1.xpose.msra.mxu0 0.0
        %467 = vmatprep.subr.mxu0 0.0
        %468 = vmatpush1.xpose.msra.mxu0 0.0
        %469 = vmatprep.subr.mxu0 0.0
        %470 = vmatpush1.xpose.msra.mxu0 0.0
        %471 = vmatprep.subr.mxu0 0.0
        %472 = vmatpush1.xpose.msra.mxu0 0.0
        %473 = vmatprep.subr.mxu0 0.0
        %474 = vmatpush1.xpose.msra.mxu0 0.0
        %475 = vmatprep.subr.mxu0 0.0
        %476 = vmatpush1.xpose.msra.mxu0 0.0
        %477 = vmatprep.subr.mxu0 0.0
        %478 = vmatpush1.xpose.msra.mxu0 0.0
        %479 = vmatprep.subr.mxu0 0.0
        %480 = vmatpush1.xpose.msra.mxu0 0.0
        %481 = vmatprep.subr.mxu0 0.0
        %482 = vmatpush1.xpose.msra.mxu0 0.0
        %483 = vmatprep.subr.mxu0 0.0
        %484 = vmatpush1.xpose.msra.mxu0 0.0
        %485 = vmatprep.subr.mxu0 0.0
        %486 = vmatpush1.xpose.msra.mxu0 0.0
        %487 = vmatprep.subr.mxu0 0.0
        %488 = vmatpush1.xpose.msra.mxu0 0.0
        %489 = vmatprep.mubr.f32.mxu0 0.0
        %v490 = vand.u32 %v204, 4294901760
        %491 = vmatmul.mubr.f32.gmra.mrb[0].mxu0 %v490
        %v492 = vpop.f32.mrb[0].mxu0
        %v493 = vadd.f32 %v342, %v492
        %v494 = vpop.f32.mrb[0].mxu0
        %495 = vdwg.mxu0
        %496 = vmatprep.subr.mxu0 0.0
        %v497 = vand.u32 %v207, 4294901760
        %v498 = vsub.f32 %v207, %v497
        %499 = vmatpush1.xpose.msra.mxu0 %v498
        %500 = vmatprep.subr.mxu0 0.0
        %v501 = vand.u32 %v210, 4294901760
        %v502 = vsub.f32 %v210, %v501
        %503 = vmatpush1.xpose.msra.mxu0 %v502
        %504 = vmatprep.subr.mxu0 0.0
        %v505 = vand.u32 %v213, 4294901760
        %v506 = vsub.f32 %v213, %v505
        %507 = vmatpush1.xpose.msra.mxu0 %v506
        %508 = vmatprep.subr.mxu0 0.0
        %v509 = vand.u32 %v216, 4294901760
        %v510 = vsub.f32 %v216, %v509
        %511 = vmatpush1.xpose.msra.mxu0 %v510
        %512 = vmatprep.subr.mxu0 0.0
        %v513 = vand.u32 %v219, 4294901760
        %v514 = vsub.f32 %v219, %v513
        %515 = vmatpush1.xpose.msra.mxu0 %v514
        %516 = vmatprep.subr.mxu0 0.0
        %v517 = vand.u32 %v222, 4294901760
        %v518 = vsub.f32 %v222, %v517
        %519 = vmatpush1.xpose.msra.mxu0 %v518
        %520 = vmatprep.subr.mxu0 0.0
        %v521 = vand.u32 %v225, 4294901760
        %v522 = vsub.f32 %v225, %v521
        %523 = vmatpush1.xpose.msra.mxu0 %v522
        %524 = vmatprep.subr.mxu0 0.0
        %v525 = vand.u32 %v228, 4294901760
        %v526 = vsub.f32 %v228, %v525
        %527 = vmatpush1.xpose.msra.mxu0 %v526
        %528 = vmatprep.subr.mxu0 0.0
        %v529 = vand.u32 %v231, 4294901760
        %v530 = vsub.f32 %v231, %v529
        %531 = vmatpush1.xpose.msra.mxu0 %v530
        %532 = vmatprep.subr.mxu0 0.0
        %v533 = vand.u32 %v234, 4294901760
        %v534 = vsub.f32 %v234, %v533
        %535 = vmatpush1.xpose.msra.mxu0 %v534
        %536 = vmatprep.subr.mxu0 0.0
        %v537 = vand.u32 %v237, 4294901760
        %v538 = vsub.f32 %v237, %v537
        %539 = vmatpush1.xpose.msra.mxu0 %v538
        %540 = vmatprep.subr.mxu0 0.0
        %v541 = vand.u32 %v240, 4294901760
        %v542 = vsub.f32 %v240, %v541
        %543 = vmatpush1.xpose.msra.mxu0 %v542
        %544 = vmatprep.subr.mxu0 0.0
        %v545 = vand.u32 %v243, 4294901760
        %v546 = vsub.f32 %v243, %v545
        %547 = vmatpush1.xpose.msra.mxu0 %v546
        %548 = vmatprep.subr.mxu0 0.0
        %v549 = vand.u32 %v246, 4294901760
        %v550 = vsub.f32 %v246, %v549
        %551 = vmatpush1.xpose.msra.mxu0 %v550
        %552 = vmatprep.subr.mxu0 0.0
        %v553 = vand.u32 %v249, 4294901760
        %v554 = vsub.f32 %v249, %v553
        %555 = vmatpush1.xpose.msra.mxu0 %v554
        %556 = vmatprep.subr.mxu0 0.0
        %v557 = vand.u32 %v252, 4294901760
        %v558 = vsub.f32 %v252, %v557
        %559 = vmatpush1.xpose.msra.mxu0 %v558
        %560 = vmatprep.subr.mxu0 0.0
        %561 = vmatpush1.xpose.msra.mxu0 0.0
        %562 = vmatprep.subr.mxu0 0.0
        %563 = vmatpush1.xpose.msra.mxu0 0.0
        %564 = vmatprep.subr.mxu0 0.0
        %565 = vmatpush1.xpose.msra.mxu0 0.0
        %566 = vmatprep.subr.mxu0 0.0
        %567 = vmatpush1.xpose.msra.mxu0 0.0
        %568 = vmatprep.subr.mxu0 0.0
        %569 = vmatpush1.xpose.msra.mxu0 0.0
        %570 = vmatprep.subr.mxu0 0.0
        %571 = vmatpush1.xpose.msra.mxu0 0.0
        %572 = vmatprep.subr.mxu0 0.0
        %573 = vmatpush1.xpose.msra.mxu0 0.0
        %574 = vmatprep.subr.mxu0 0.0
        %575 = vmatpush1.xpose.msra.mxu0 0.0
        %576 = vmatprep.subr.mxu0 0.0
        %577 = vmatpush1.xpose.msra.mxu0 0.0
        %578 = vmatprep.subr.mxu0 0.0
        %579 = vmatpush1.xpose.msra.mxu0 0.0
        %580 = vmatprep.subr.mxu0 0.0
        %581 = vmatpush1.xpose.msra.mxu0 0.0
        %582 = vmatprep.subr.mxu0 0.0
        %583 = vmatpush1.xpose.msra.mxu0 0.0
        %584 = vmatprep.subr.mxu0 0.0
        %585 = vmatpush1.xpose.msra.mxu0 0.0
        %586 = vmatprep.subr.mxu0 0.0
        %587 = vmatpush1.xpose.msra.mxu0 0.0
        %588 = vmatprep.subr.mxu0 0.0
        %589 = vmatpush1.xpose.msra.mxu0 0.0
        %590 = vmatprep.subr.mxu0 0.0
        %591 = vmatpush1.xpose.msra.mxu0 0.0
        %592 = vmatprep.mubr.f32.mxu0 0.0
        %v593 = vand.u32 %v204, 4294901760
        %v594 = vsub.f32 %v204, %v593
        %595 = vmatmul.mubr.f32.gmra.mrb[0].mxu0 %v594
        %v596 = vpop.f32.mrb[0].mxu0
        %v597 = vadd.f32 %v493, %v596
        %v598 = vpop.f32.mrb[0].mxu0
        %599 = vdwg.mxu0
        %600 = vmatprep.subr.mxu0 0.0
        %v601 = vand.u32 %v207, 4294901760
        %602 = vmatpush1.xpose.msra.mxu0 %v601
        %603 = vmatprep.subr.mxu0 0.0
        %v604 = vand.u32 %v210, 4294901760
        %605 = vmatpush1.xpose.msra.mxu0 %v604
        %606 = vmatprep.subr.mxu0 0.0
        %v607 = vand.u32 %v213, 4294901760
        %608 = vmatpush1.xpose.msra.mxu0 %v607
        %609 = vmatprep.subr.mxu0 0.0
        %v610 = vand.u32 %v216, 4294901760
        %611 = vmatpush1.xpose.msra.mxu0 %v610
        %612 = vmatprep.subr.mxu0 0.0
        %v613 = vand.u32 %v219, 4294901760
        %614 = vmatpush1.xpose.msra.mxu0 %v613
        %615 = vmatprep.subr.mxu0 0.0
        %v616 = vand.u32 %v222, 4294901760
        %617 = vmatpush1.xpose.msra.mxu0 %v616
        %618 = vmatprep.subr.mxu0 0.0
        %v619 = vand.u32 %v225, 4294901760
        %620 = vmatpush1.xpose.msra.mxu0 %v619
        %621 = vmatprep.subr.mxu0 0.0
        %v622 = vand.u32 %v228, 4294901760
        %623 = vmatpush1.xpose.msra.mxu0 %v622
        %624 = vmatprep.subr.mxu0 0.0
        %v625 = vand.u32 %v231, 4294901760
        %626 = vmatpush1.xpose.msra.mxu0 %v625
        %627 = vmatprep.subr.mxu0 0.0
        %v628 = vand.u32 %v234, 4294901760
        %629 = vmatpush1.xpose.msra.mxu0 %v628
        %630 = vmatprep.subr.mxu0 0.0
        %v631 = vand.u32 %v237, 4294901760
        %632 = vmatpush1.xpose.msra.mxu0 %v631
        %633 = vmatprep.subr.mxu0 0.0
        %v634 = vand.u32 %v240, 4294901760
        %635 = vmatpush1.xpose.msra.mxu0 %v634
        %636 = vmatprep.subr.mxu0 0.0
        %v637 = vand.u32 %v243, 4294901760
        %638 = vmatpush1.xpose.msra.mxu0 %v637
        %639 = vmatprep.subr.mxu0 0.0
        %v640 = vand.u32 %v246, 4294901760
        %641 = vmatpush1.xpose.msra.mxu0 %v640
        %642 = vmatprep.subr.mxu0 0.0
        %v643 = vand.u32 %v249, 4294901760
        %644 = vmatpush1.xpose.msra.mxu0 %v643
        %645 = vmatprep.subr.mxu0 0.0
        %v646 = vand.u32 %v252, 4294901760
        %647 = vmatpush1.xpose.msra.mxu0 %v646
        %648 = vmatprep.subr.mxu0 0.0
        %649 = vmatpush1.xpose.msra.mxu0 0.0
        %650 = vmatprep.subr.mxu0 0.0
        %651 = vmatpush1.xpose.msra.mxu0 0.0
        %652 = vmatprep.subr.mxu0 0.0
        %653 = vmatpush1.xpose.msra.mxu0 0.0
        %654 = vmatprep.subr.mxu0 0.0
        %655 = vmatpush1.xpose.msra.mxu0 0.0
        %656 = vmatprep.subr.mxu0 0.0
        %657 = vmatpush1.xpose.msra.mxu0 0.0
        %658 = vmatprep.subr.mxu0 0.0
        %659 = vmatpush1.xpose.msra.mxu0 0.0
        %660 = vmatprep.subr.mxu0 0.0
        %661 = vmatpush1.xpose.msra.mxu0 0.0
        %662 = vmatprep.subr.mxu0 0.0
        %663 = vmatpush1.xpose.msra.mxu0 0.0
        %664 = vmatprep.subr.mxu0 0.0
        %665 = vmatpush1.xpose.msra.mxu0 0.0
        %666 = vmatprep.subr.mxu0 0.0
        %667 = vmatpush1.xpose.msra.mxu0 0.0
        %668 = vmatprep.subr.mxu0 0.0
        %669 = vmatpush1.xpose.msra.mxu0 0.0
        %670 = vmatprep.subr.mxu0 0.0
        %671 = vmatpush1.xpose.msra.mxu0 0.0
        %672 = vmatprep.subr.mxu0 0.0
        %673 = vmatpush1.xpose.msra.mxu0 0.0
        %674 = vmatprep.subr.mxu0 0.0
        %675 = vmatpush1.xpose.msra.mxu0 0.0
        %676 = vmatprep.subr.mxu0 0.0
        %677 = vmatpush1.xpose.msra.mxu0 0.0
        %678 = vmatprep.subr.mxu0 0.0
        %679 = vmatpush1.xpose.msra.mxu0 0.0
        %680 = vmatprep.mubr.f32.mxu0 0.0
        %v681 = vand.u32 %v204, 4294901760
        %v682 = vsub.f32 %v204, %v681
        %v683 = vand.u32 %v682, 4294901760
        %684 = vmatmul.mubr.f32.gmra.mrb[0].mxu0 %v683
        %v685 = vpop.f32.mrb[0].mxu0
        %v686 = vadd.f32 %v597, %v685
        %v687 = vpop.f32.mrb[0].mxu0
        %688 = vdwg.mxu0
        %689 = vmatprep.subr.mxu0 0.0
        %v690 = vand.u32 %v207, 4294901760
        %v691 = vsub.f32 %v207, %v690
        %v692 = vand.u32 %v691, 4294901760
        %693 = vmatpush1.xpose.msra.mxu0 %v692
        %694 = vmatprep.subr.mxu0 0.0
        %v695 = vand.u32 %v210, 4294901760
        %v696 = vsub.f32 %v210, %v695
        %v697 = vand.u32 %v696, 4294901760
        %698 = vmatpush1.xpose.msra.mxu0 %v697
        %699 = vmatprep.subr.mxu0 0.0
        %v700 = vand.u32 %v213, 4294901760
        %v701 = vsub.f32 %v213, %v700
        %v702 = vand.u32 %v701, 4294901760
        %703 = vmatpush1.xpose.msra.mxu0 %v702
        %704 = vmatprep.subr.mxu0 0.0
        %v705 = vand.u32 %v216, 4294901760
        %v706 = vsub.f32 %v216, %v705
        %v707 = vand.u32 %v706, 4294901760
        %708 = vmatpush1.xpose.msra.mxu0 %v707
        %709 = vmatprep.subr.mxu0 0.0
        %v710 = vand.u32 %v219, 4294901760
        %v711 = vsub.f32 %v219, %v710
        %v712 = vand.u32 %v711, 4294901760
        %713 = vmatpush1.xpose.msra.mxu0 %v712
        %714 = vmatprep.subr.mxu0 0.0
        %v715 = vand.u32 %v222, 4294901760
        %v716 = vsub.f32 %v222, %v715
        %v717 = vand.u32 %v716, 4294901760
        %718 = vmatpush1.xpose.msra.mxu0 %v717
        %719 = vmatprep.subr.mxu0 0.0
        %v720 = vand.u32 %v225, 4294901760
        %v721 = vsub.f32 %v225, %v720
        %v722 = vand.u32 %v721, 4294901760
        %723 = vmatpush1.xpose.msra.mxu0 %v722
        %724 = vmatprep.subr.mxu0 0.0
        %v725 = vand.u32 %v228, 4294901760
        %v726 = vsub.f32 %v228, %v725
        %v727 = vand.u32 %v726, 4294901760
        %728 = vmatpush1.xpose.msra.mxu0 %v727
        %729 = vmatprep.subr.mxu0 0.0
        %v730 = vand.u32 %v231, 4294901760
        %v731 = vsub.f32 %v231, %v730
        %v732 = vand.u32 %v731, 4294901760
        %733 = vmatpush1.xpose.msra.mxu0 %v732
        %734 = vmatprep.subr.mxu0 0.0
        %v735 = vand.u32 %v234, 4294901760
        %v736 = vsub.f32 %v234, %v735
        %v737 = vand.u32 %v736, 4294901760
        %738 = vmatpush1.xpose.msra.mxu0 %v737
        %739 = vmatprep.subr.mxu0 0.0
        %v740 = vand.u32 %v237, 4294901760
        %v741 = vsub.f32 %v237, %v740
        %v742 = vand.u32 %v741, 4294901760
        %743 = vmatpush1.xpose.msra.mxu0 %v742
        %744 = vmatprep.subr.mxu0 0.0
        %v745 = vand.u32 %v240, 4294901760
        %v746 = vsub.f32 %v240, %v745
        %v747 = vand.u32 %v746, 4294901760
        %748 = vmatpush1.xpose.msra.mxu0 %v747
        %749 = vmatprep.subr.mxu0 0.0
        %v750 = vand.u32 %v243, 4294901760
        %v751 = vsub.f32 %v243, %v750
        %v752 = vand.u32 %v751, 4294901760
        %753 = vmatpush1.xpose.msra.mxu0 %v752
        %754 = vmatprep.subr.mxu0 0.0
        %v755 = vand.u32 %v246, 4294901760
        %v756 = vsub.f32 %v246, %v755
        %v757 = vand.u32 %v756, 4294901760
        %758 = vmatpush1.xpose.msra.mxu0 %v757
        %759 = vmatprep.subr.mxu0 0.0
        %v760 = vand.u32 %v249, 4294901760
        %v761 = vsub.f32 %v249, %v760
        %v762 = vand.u32 %v761, 4294901760
        %763 = vmatpush1.xpose.msra.mxu0 %v762
        %764 = vmatprep.subr.mxu0 0.0
        %v765 = vand.u32 %v252, 4294901760
        %v766 = vsub.f32 %v252, %v765
        %v767 = vand.u32 %v766, 4294901760
        %768 = vmatpush1.xpose.msra.mxu0 %v767
        %769 = vmatprep.subr.mxu0 0.0
        %770 = vmatpush1.xpose.msra.mxu0 0.0
        %771 = vmatprep.subr.mxu0 0.0
        %772 = vmatpush1.xpose.msra.mxu0 0.0
        %773 = vmatprep.subr.mxu0 0.0
        %774 = vmatpush1.xpose.msra.mxu0 0.0
        %775 = vmatprep.subr.mxu0 0.0
        %776 = vmatpush1.xpose.msra.mxu0 0.0
        %777 = vmatprep.subr.mxu0 0.0
        %778 = vmatpush1.xpose.msra.mxu0 0.0
        %779 = vmatprep.subr.mxu0 0.0
        %780 = vmatpush1.xpose.msra.mxu0 0.0
        %781 = vmatprep.subr.mxu0 0.0
        %782 = vmatpush1.xpose.msra.mxu0 0.0
        %783 = vmatprep.subr.mxu0 0.0
        %784 = vmatpush1.xpose.msra.mxu0 0.0
        %785 = vmatprep.subr.mxu0 0.0
        %786 = vmatpush1.xpose.msra.mxu0 0.0
        %787 = vmatprep.subr.mxu0 0.0
        %788 = vmatpush1.xpose.msra.mxu0 0.0
        %789 = vmatprep.subr.mxu0 0.0
        %790 = vmatpush1.xpose.msra.mxu0 0.0
        %791 = vmatprep.subr.mxu0 0.0
        %792 = vmatpush1.xpose.msra.mxu0 0.0
        %793 = vmatprep.subr.mxu0 0.0
        %794 = vmatpush1.xpose.msra.mxu0 0.0
        %795 = vmatprep.subr.mxu0 0.0
        %796 = vmatpush1.xpose.msra.mxu0 0.0
        %797 = vmatprep.subr.mxu0 0.0
        %798 = vmatpush1.xpose.msra.mxu0 0.0
        %799 = vmatprep.subr.mxu0 0.0
        %800 = vmatpush1.xpose.msra.mxu0 0.0
        %801 = vmatprep.mubr.f32.mxu0 0.0
        %v802 = vand.u32 %v204, 4294901760
        %803 = vmatmul.mubr.f32.gmra.mrb[0].mxu0 %v802
        %v804 = vpop.f32.mrb[0].mxu0
        %v805 = vadd.f32 %v686, %v804
        %v806 = vpop.f32.mrb[0].mxu0
        %807 = vdwg.mxu0
        %808 = vmatprep.subr.mxu0 0.0
        %v809 = vand.u32 %v207, 4294901760
        %810 = vmatpush1.xpose.msra.mxu0 %v809
        %811 = vmatprep.subr.mxu0 0.0
        %v812 = vand.u32 %v210, 4294901760
        %813 = vmatpush1.xpose.msra.mxu0 %v812
        %814 = vmatprep.subr.mxu0 0.0
        %v815 = vand.u32 %v213, 4294901760
        %816 = vmatpush1.xpose.msra.mxu0 %v815
        %817 = vmatprep.subr.mxu0 0.0
        %v818 = vand.u32 %v216, 4294901760
        %819 = vmatpush1.xpose.msra.mxu0 %v818
        %820 = vmatprep.subr.mxu0 0.0
        %v821 = vand.u32 %v219, 4294901760
        %822 = vmatpush1.xpose.msra.mxu0 %v821
        %823 = vmatprep.subr.mxu0 0.0
        %v824 = vand.u32 %v222, 4294901760
        %825 = vmatpush1.xpose.msra.mxu0 %v824
        %826 = vmatprep.subr.mxu0 0.0
        %v827 = vand.u32 %v225, 4294901760
        %828 = vmatpush1.xpose.msra.mxu0 %v827
        %829 = vmatprep.subr.mxu0 0.0
        %v830 = vand.u32 %v228, 4294901760
        %831 = vmatpush1.xpose.msra.mxu0 %v830
        %832 = vmatprep.subr.mxu0 0.0
        %v833 = vand.u32 %v231, 4294901760
        %834 = vmatpush1.xpose.msra.mxu0 %v833
        %835 = vmatprep.subr.mxu0 0.0
        %v836 = vand.u32 %v234, 4294901760
        %837 = vmatpush1.xpose.msra.mxu0 %v836
        %838 = vmatprep.subr.mxu0 0.0
        %v839 = vand.u32 %v237, 4294901760
        %840 = vmatpush1.xpose.msra.mxu0 %v839
        %841 = vmatprep.subr.mxu0 0.0
        %v842 = vand.u32 %v240, 4294901760
        %843 = vmatpush1.xpose.msra.mxu0 %v842
        %844 = vmatprep.subr.mxu0 0.0
        %v845 = vand.u32 %v243, 4294901760
        %846 = vmatpush1.xpose.msra.mxu0 %v845
        %847 = vmatprep.subr.mxu0 0.0
        %v848 = vand.u32 %v246, 4294901760
        %849 = vmatpush1.xpose.msra.mxu0 %v848
        %850 = vmatprep.subr.mxu0 0.0
        %v851 = vand.u32 %v249, 4294901760
        %852 = vmatpush1.xpose.msra.mxu0 %v851
        %853 = vmatprep.subr.mxu0 0.0
        %v854 = vand.u32 %v252, 4294901760
        %855 = vmatpush1.xpose.msra.mxu0 %v854
        %856 = vmatprep.subr.mxu0 0.0
        %857 = vmatpush1.xpose.msra.mxu0 0.0
        %858 = vmatprep.subr.mxu0 0.0
        %859 = vmatpush1.xpose.msra.mxu0 0.0
        %860 = vmatprep.subr.mxu0 0.0
        %861 = vmatpush1.xpose.msra.mxu0 0.0
        %862 = vmatprep.subr.mxu0 0.0
        %863 = vmatpush1.xpose.msra.mxu0 0.0
        %864 = vmatprep.subr.mxu0 0.0
        %865 = vmatpush1.xpose.msra.mxu0 0.0
        %866 = vmatprep.subr.mxu0 0.0
        %867 = vmatpush1.xpose.msra.mxu0 0.0
        %868 = vmatprep.subr.mxu0 0.0
        %869 = vmatpush1.xpose.msra.mxu0 0.0
        %870 = vmatprep.subr.mxu0 0.0
        %871 = vmatpush1.xpose.msra.mxu0 0.0
        %872 = vmatprep.subr.mxu0 0.0
        %873 = vmatpush1.xpose.msra.mxu0 0.0
        %874 = vmatprep.subr.mxu0 0.0
        %875 = vmatpush1.xpose.msra.mxu0 0.0
        %876 = vmatprep.subr.mxu0 0.0
        %877 = vmatpush1.xpose.msra.mxu0 0.0
        %878 = vmatprep.subr.mxu0 0.0
        %879 = vmatpush1.xpose.msra.mxu0 0.0
        %880 = vmatprep.subr.mxu0 0.0
        %881 = vmatpush1.xpose.msra.mxu0 0.0
        %882 = vmatprep.subr.mxu0 0.0
        %883 = vmatpush1.xpose.msra.mxu0 0.0
        %884 = vmatprep.subr.mxu0 0.0
        %885 = vmatpush1.xpose.msra.mxu0 0.0
        %886 = vmatprep.subr.mxu0 0.0
        %887 = vmatpush1.xpose.msra.mxu0 0.0
        %888 = vmatprep.mubr.f32.mxu0 0.0
        %v889 = vand.u32 %v204, 4294901760
        %890 = vmatmul.mubr.f32.gmra.mrb[0].mxu0 %v889
        %v891 = vpop.f32.mrb[0].mxu0
        %v892 = vadd.f32 %v805, %v891
        %v893 = vpop.f32.mrb[0].mxu0
        %894 = vdwg.mxu0
        %v895 = vmul.f32 %v201, %v201
        %vm896 = vcmask 516096
        %v897 = vsel %vm896, %v895, 0.0
        %898 = vadd.xlane.f32.xlu0 %v897
        %v899 = vpop.xlane.xlu0 %898
        %v900 = vrsqrt.pop %v899
        %v901 = vmul.f32 %v899, %v900
        %vm902 = vcmp.eq.f32.partialorder %v899, inf
        %v903 = vsel %vm902, %v899, %v901
        %vm904 = vcmp.eq.f32.partialorder %v899, 0.0
        %v905 = vand.u32 %v899, 2147483648
        %v906 = vsel %vm904, %v905, %v903
        %v907 = vld [vmem:[%s184] sm:$0x1]
        %v908 = vmul.f32 %v906, 0.2
        %v909 = vmul.f32 %v907, %v908
        %v911 = vlaneseq
        %v912 = vshrl.u32 %v911, 7
        %v913 = vsub.s32 0, %v912
        %v914 = vrot.slane %v909, %v913
        %vm916 = vcmask 1040384
        %v917 = vsel %vm916, %v892, %v914
        %918 = vst [vmem:[%s175] sm:$0x3] %v917
        %s919 = sand.u32 %s98, 1
        %s920 = scalar_lea.sflag [#allocation3], %s919
        %s921 = sand.u32 %s98, 1
        %s922 = smul.addr %s921, 2
        %s923 = scalar_lea.vmem [#allocation2], %s922
        // Predicated region
        $region33: #{tpu_custom_call.1} parent=31 // pred_check
          %p924 = pneg %p108
        $region34: #{tpu_custom_call.1} parent=31 // pred_check_branch
          %926 = sbr.rel (%p924) target = $region36
        $region35: #{tpu_custom_call.1} parent=31 // pred_region
          %s928 = ssub.s32 32, 32
          %929 = vsyncadd %s920, %s928
          %s930 = smul.addr %s17, 32
          %s931 = scalar_lea.hbm %s3, %s930
          %s933 = sshll.u32 %s923, 4
          %s934 = int_to_ptr.vmem [resolvable:$true] %s933
          %936 = dma.vmem_to_hbm [thread:$0]  %s934, 32, %s931, %s920
        $region36: #{tpu_custom_call.1} parent=31 // pred_fallthru
          _
      $region32: #{tpu_custom_call.1} parent=5 // pred_fallthru
        _
      %p937 = scmp.le.s32.totalorder 2, %s12
      // Predicated region
      $region37: #{tpu_custom_call.1} parent=5 // pred_check
        %p938 = pneg %p937
      $region38: #{tpu_custom_call.1} parent=5 // pred_check_branch
        %940 = sbr.rel (%p938) target = $region40
      $region39: #{tpu_custom_call.1} parent=5 // pred_region
        %s941 = ssub.s32 %s12, 2
        // Predicated region
        $region41: #{tpu_custom_call.1} parent=39 // pred_check
          %p942 = pneg %p114
        $region42: #{tpu_custom_call.1} parent=39 // pred_check_branch
          %944 = sbr.rel (%p942) target = $region44
        $region43: #{tpu_custom_call.1} parent=39 // pred_region
          %s945 = sand.u32 %s99, 1
          %s946 = scalar_lea.sflag [#allocation3], %s945
          %s947 = sand.u32 %s99, 1
          %s948 = smul.addr %s947, 2
          %s949 = scalar_lea.vmem [#allocation2], %s948
          %950 = dma.done %s946, 32
        $region44: #{tpu_custom_call.1} parent=39 // pred_fallthru
          _
      $region40: #{tpu_custom_call.1} parent=5 // pred_fallthru
        _
    $region6: #{tpu_custom_call.1} parent=1 // loop_footer
      %s16 = sadd.s32 1, %s12
    $region7: #{tpu_custom_call.1} parent=1 // loop_footer_branch
      %11 = sbr.rel target = $region3
    $region8: #{tpu_custom_call.1} parent=1 // loop_exit
      _
    %951 = vsyncpa [#allocation3], 1
    %s952 = scalar_lea.sflag [#allocation3], 1
    %953 = vsyncpa %s952, 1

</llo_original>
